<compile_context>
chip_gen: v7x
topology: tpu7x:2x2x1
jax: 0.10.0
libtpu: 0.0.40
codegen_flags: <defaults>
</compile_context>

<pallas_src>
import jax
import jax.numpy as jnp
from jax.experimental import pallas as pl
from jax.experimental.pallas import tpu as pltpu


def _round_up(x: int, m: int) -> int:
    return (x + m - 1) // m * m


def autoencoder_kernel(x_ref, wg_t_ref, bg_ref, wh_t_ref, bh_ref, o_ref):
    # x_ref:    (TB, NQp)  bf16 tile of user vectors
    # wg_t_ref: (NQp, Kp)  bf16, g.weight transposed (resident across grid)
    # bg_ref:   (1,  Kp)   f32
    # wh_t_ref: (Kp, NQp)  bf16, h.weight transposed (resident across grid)
    # bh_ref:   (1,  NQp)  f32
    # o_ref:    (TB, NQp)  f32 output tile
    z1 = jnp.dot(x_ref[...], wg_t_ref[...], preferred_element_type=jnp.float32)
    enc = jax.nn.sigmoid(z1 + bg_ref[...])                    # bias + sigmoid in f32
    z2 = jnp.dot(enc.astype(jnp.bfloat16), wh_t_ref[...],
                 preferred_element_type=jnp.float32)
    o_ref[...] = jax.nn.sigmoid(z2 + bh_ref[...]).astype(o_ref.dtype)


_VMEM_TILE_BUDGET = 48 * 1024 * 1024   # conservative: fits v7x's 64 MiB VMEM
_VMEM_LIMIT_CAP = 56 * 1024 * 1024


def _pick_tile_b(B: int, NQp: int, Kp: int) -> int:
    """Batch tile: VMEM-aware; prefers an even grid-step count >= 2 (v7x TCs)."""
    if B < 128:
        # Single grid step; a 16-multiple keeps bf16 sublane packing legal and
        # avoids wasting HBM traffic / MXU work on up to 16x zero rows.
        return _round_up(max(B, 8), 16)
    # Double-buffered weights/biases (constant index maps) + per-candidate
    # double-buffered x (bf16) and out (f32) tiles.
    weight_bytes = 2 * (2 * NQp * Kp) * 2 + 2 * (Kp + NQp) * 4 * 2
    feasible = []
    for cand in (512, 256, 128):
        tile_bytes = 2 * cand * NQp * (2 + 4)
        if tile_bytes + weight_bytes <= _VMEM_TILE_BUDGET:
            feasible.append(cand)
    if not feasible:
        return 128
    for cand in feasible:
        steps = -(-B // cand)
        if steps >= 2 and steps % 2 == 0:
            return cand
    return feasible[0]


def prepare_params(wg, bg, wh, bh):
    """One-time parameter prep: pad feature dims to 128-multiples, transpose,
    cast weights to bf16, reshape biases to (1, dim) f32."""
    K, NQ = wg.shape
    assert wh.shape == (NQ, K) and bg.shape == (K,) and bh.shape == (NQ,)
    NQp, Kp = _round_up(NQ, 128), _round_up(K, 128)
    wg_t = jnp.zeros((NQp, Kp), jnp.bfloat16).at[:NQ, :K].set(
        wg.T.astype(jnp.bfloat16))
    wh_t = jnp.zeros((Kp, NQp), jnp.bfloat16).at[:K, :NQ].set(
        wh.T.astype(jnp.bfloat16))
    bg2 = jnp.zeros((1, Kp), jnp.float32).at[0, :K].set(bg.astype(jnp.float32))
    bh2 = jnp.zeros((1, NQp), jnp.float32).at[0, :NQ].set(bh.astype(jnp.float32))
    return wg_t, bg2, wh_t, bh2


@jax.jit
def autoencoder_forward(x, wg_t, bg2, wh_t, bh2):
    """x: (B, num_question) f32; remaining args from prepare_params().
    Returns sigmoid(sigmoid(x @ Wg.T + bg) @ Wh.T + bh) as (B, num_question) f32."""
    B, NQ = x.shape
    NQp, Kp = wg_t.shape
    tile_b = _pick_tile_b(B, NQp, Kp)
    Bp = _round_up(B, tile_b)

    # Cast to bf16 BEFORE padding (halves wrapper HBM traffic); skip the pad
    # entirely when shapes already align. Zero padding is exact: padded
    # encoding columns are sigmoid(0)=0.5 but multiply all-zero rows of Wh^T,
    # and padded rows/cols of the output are sliced off below.
    xb = x.astype(jnp.bfloat16)
    if Bp != B or NQp != NQ:
        xb = jnp.pad(xb, ((0, Bp - B), (0, NQp - NQ)))

    # Advisory cost estimate so XLA schedules the custom call realistically.
    cost = pl.CostEstimate(
        flops=4 * Bp * NQp * Kp,                      # two matmuls, 2*M*N*K each
        transcendentals=2 * Bp * (Kp + NQp),          # sigmoid ~ exp + reciprocal
        bytes_accessed=(Bp * NQp * 2                  # x, bf16
                        + 2 * NQp * Kp * 2            # both weights, bf16
                        + (Kp + NQp) * 4              # biases, f32
                        + Bp * NQp * 4),              # output, f32
    )

    # Explicit VMEM budget (double-buffered tiles, weights, biases), capped
    # well below v7x's 64 MiB physical VMEM.
    vmem_needed = (
        2 * tile_b * NQp * 2        # x tiles, bf16, double-buffered
        + 2 * tile_b * NQp * 4      # out tiles, f32, double-buffered
        + 2 * 2 * NQp * Kp * 2      # weights, bf16, double-buffered
        + 2 * (Kp + NQp) * 4 * 2    # biases, f32, double-buffered
    )
    vmem_limit = int(min(max(2 * vmem_needed, 32 * 1024 * 1024), _VMEM_LIMIT_CAP))

    out = pl.pallas_call(
        autoencoder_kernel,
        out_shape=jax.ShapeDtypeStruct((Bp, NQp), jnp.float32),
        grid_spec=pltpu.PrefetchScalarGridSpec(
            num_scalar_prefetch=0,
            grid=(Bp // tile_b,),
            in_specs=[
                pl.BlockSpec((tile_b, NQp), lambda i: (i, 0)),   # x tile
                pl.BlockSpec((NQp, Kp), lambda i: (0, 0)),       # Wg^T (resident)
                pl.BlockSpec((1, Kp), lambda i: (0, 0)),         # bg
                pl.BlockSpec((Kp, NQp), lambda i: (0, 0)),       # Wh^T (resident)
                pl.BlockSpec((1, NQp), lambda i: (0, 0)),        # bh
            ],
            out_specs=pl.BlockSpec((tile_b, NQp), lambda i: (i, 0)),
        ),
        compiler_params=pltpu.CompilerParams(
            dimension_semantics=("parallel",),
            vmem_limit_bytes=vmem_limit,
        ),
        cost_estimate=cost,
    )(xb, wg_t, bg2, wh_t, bh2)

    if Bp != B or NQp != NQ:
        out = out[:B, :NQ]
    return out


def autoencoder_reference(x, wg, bg, wh, bh):
    enc = jax.nn.sigmoid(x @ wg.T + bg)
    return jax.nn.sigmoid(enc @ wh.T + bh)


if __name__ == "__main__":
    # Module-consistent small shapes: num_question = 256, k = 100 (module
    # default), batch = 256 (=> 2 parallel grid steps of tile_b = 128, so both
    # v7x TensorCores get equal work).
    B, NQ, K = 256, 256, 100

    key = jax.random.PRNGKey(0)
    kx, kwg, kbg, kwh, kbh = jax.random.split(key, 5)

    x = jax.random.normal(kx, (B, NQ), dtype=jnp.float32)
    # PyTorch Linear parameter shapes: weight = (out_features, in_features).
    wg = jax.random.normal(kwg, (K, NQ), dtype=jnp.float32) * 0.05
    bg = jax.random.normal(kbg, (K,), dtype=jnp.float32) * 0.05
    wh = jax.random.normal(kwh, (NQ, K), dtype=jnp.float32) * 0.05
    bh = jax.random.normal(kbh, (NQ,), dtype=jnp.float32) * 0.05

    params = prepare_params(wg, bg, wh, bh)     # one-time weight prep
    out = autoencoder_forward(x, *params)
    out = jax.block_until_ready(out)

    ref = autoencoder_reference(x, wg, bg, wh, bh)
    assert out.shape == (B, NQ)
    max_err = float(jnp.max(jnp.abs(out - ref)))
    # bf16 matmul operands with f32 accumulation: loosened tolerance.
    assert max_err < 2e-2, f"mismatch vs reference: max abs err = {max_err}"

    print("KERNEL_OK")
</pallas_src>

<mosaic_0001>
module attributes {stable_mosaic.version = 11 : i64} {
  func.func @autoencoder_kernel(%arg0: i32, %arg1: memref<128x256xbf16, #tpu.memory_space<vmem>>, %arg2: memref<256x128xbf16, #tpu.memory_space<vmem>>, %arg3: memref<1x128xf32, #tpu.memory_space<vmem>>, %arg4: memref<128x256xbf16, #tpu.memory_space<vmem>>, %arg5: memref<1x256xf32, #tpu.memory_space<vmem>>, %arg6: memref<128x256xf32, #tpu.memory_space<vmem>>) attributes {dimension_semantics = [#tpu.dimension_semantics<parallel>], iteration_bounds = array<i64: 2>, scalar_prefetch = 0 : i64, scratch_operands = 0 : i64, tpu.core_type = #tpu.core_type<tc>, window_params = [{transform_indices = @transform_0, window_bounds = array<i64: 128, 256>}, {pipeline_mode = #tpu.pipeline_mode<synchronous>, transform_indices = @transform_1, window_bounds = array<i64: 256, 128>}, {pipeline_mode = #tpu.pipeline_mode<synchronous>, transform_indices = @transform_2, window_bounds = array<i64: 1, 128>}, {pipeline_mode = #tpu.pipeline_mode<synchronous>, transform_indices = @transform_3, window_bounds = array<i64: 128, 256>}, {pipeline_mode = #tpu.pipeline_mode<synchronous>, transform_indices = @transform_4, window_bounds = array<i64: 1, 256>}, {transform_indices = @transform_5, window_bounds = array<i64: 128, 256>}]} {
    %c0 = arith.constant 0 : index
    %c0_0 = arith.constant 0 : index
    %0 = vector.load %arg1[%c0, %c0_0] : memref<128x256xbf16, #tpu.memory_space<vmem>>, vector<128x256xbf16>
    %c0_1 = arith.constant 0 : index
    %c0_2 = arith.constant 0 : index
    %1 = vector.load %arg2[%c0_1, %c0_2] : memref<256x128xbf16, #tpu.memory_space<vmem>>, vector<256x128xbf16>
    %cst = arith.constant dense<0.000000e+00> : vector<128x128xf32>
    %2 = tpu.matmul %0, %1, %cst {dimension_numbers = #tpu.dot_dimension_numbers<[1], [0], [0], [1], [0, 0, 1, 1], [], []>} : vector<128x256xbf16>, vector<256x128xbf16>, vector<128x128xf32> -> vector<128x128xf32>
    %c0_3 = arith.constant 0 : index
    %c0_4 = arith.constant 0 : index
    %3 = vector.load %arg3[%c0_3, %c0_4] : memref<1x128xf32, #tpu.memory_space<vmem>>, vector<1x128xf32>
    %4 = vector.broadcast %3 : vector<1x128xf32> to vector<128x128xf32>
    %5 = arith.addf %2, %4 : vector<128x128xf32>
    %6 = arith.negf %5 : vector<128x128xf32>
    %7 = math.exp %6 : vector<128x128xf32>
    %cst_5 = arith.constant 1.000000e+00 : f32
    %8 = vector.broadcast %cst_5 : f32 to vector<128x128xf32>
    %9 = arith.addf %8, %7 : vector<128x128xf32>
    %10 = arith.divf %8, %9 : vector<128x128xf32>
    %11 = arith.truncf %10 : vector<128x128xf32> to vector<128x128xbf16>
    %c0_6 = arith.constant 0 : index
    %c0_7 = arith.constant 0 : index
    %12 = vector.load %arg4[%c0_6, %c0_7] : memref<128x256xbf16, #tpu.memory_space<vmem>>, vector<128x256xbf16>
    %cst_8 = arith.constant dense<0.000000e+00> : vector<128x256xf32>
    %13 = tpu.matmul %11, %12, %cst_8 {dimension_numbers = #tpu.dot_dimension_numbers<[1], [0], [0], [1], [0, 0, 1, 1], [], []>} : vector<128x128xbf16>, vector<128x256xbf16>, vector<128x256xf32> -> vector<128x256xf32>
    %c0_9 = arith.constant 0 : index
    %c0_10 = arith.constant 0 : index
    %14 = vector.load %arg5[%c0_9, %c0_10] : memref<1x256xf32, #tpu.memory_space<vmem>>, vector<1x256xf32>
    %15 = vector.broadcast %14 : vector<1x256xf32> to vector<128x256xf32>
    %16 = arith.addf %13, %15 : vector<128x256xf32>
    %17 = arith.negf %16 : vector<128x256xf32>
    %18 = math.exp %17 : vector<128x256xf32>
    %cst_11 = arith.constant 1.000000e+00 : f32
    %19 = vector.broadcast %cst_11 : f32 to vector<128x256xf32>
    %20 = arith.addf %19, %18 : vector<128x256xf32>
    %21 = arith.divf %19, %20 : vector<128x256xf32>
    %c0_12 = arith.constant 0 : index
    %c0_13 = arith.constant 0 : index
    %22 = vector.load %arg6[%c0_12, %c0_13] : memref<128x256xf32, #tpu.memory_space<vmem>>, vector<128x256xf32>
    tpu.vector_store %arg6[%c0_12, %c0_13], %21 {strides = array<i32>} : memref<128x256xf32, #tpu.memory_space<vmem>>, vector<128x256xf32>,
    return
  }
  func.func @transform_0(%arg0: i32) -> (i32, i32) {
    %c0_i32 = arith.constant 0 : i32
    %c0_i32_0 = arith.constant 0 : i32
    return %arg0, %c0_i32 : i32, i32
  }
  func.func @transform_1(%arg0: i32) -> (i32, i32) {
    %c0_i32 = arith.constant 0 : i32
    %c0_i32_0 = arith.constant 0 : i32
    %c0_i32_1 = arith.constant 0 : i32
    return %c0_i32, %c0_i32_0 : i32, i32
  }
  func.func @transform_2(%arg0: i32) -> (i32, i32) {
    %c0_i32 = arith.constant 0 : i32
    %c0_i32_0 = arith.constant 0 : i32
    %c0_i32_1 = arith.constant 0 : i32
    return %c0_i32, %c0_i32_0 : i32, i32
  }
  func.func @transform_3(%arg0: i32) -> (i32, i32) {
    %c0_i32 = arith.constant 0 : i32
    %c0_i32_0 = arith.constant 0 : i32
    %c0_i32_1 = arith.constant 0 : i32
    return %c0_i32, %c0_i32_0 : i32, i32
  }
  func.func @transform_4(%arg0: i32) -> (i32, i32) {
    %c0_i32 = arith.constant 0 : i32
    %c0_i32_0 = arith.constant 0 : i32
    %c0_i32_1 = arith.constant 0 : i32
    return %c0_i32, %c0_i32_0 : i32, i32
  }
  func.func @transform_5(%arg0: i32) -> (i32, i32) {
    %c0_i32 = arith.constant 0 : i32
    %c0_i32_0 = arith.constant 0 : i32
    return %arg0, %c0_i32 : i32, i32
  }
}

</mosaic_0001>

<llo_original>
// kernel: autoencoder_forward.1
$region0: #{autoencoder_forward.1}
  #allocation0 [shape = 'u32[]', space=smem, size = 0x4, offset = 0x4, fixed_abs, tag = 'smem constant byte address 0x4 - core index']
  #allocation1 [shape = 'u32[144,128]{1,0:T(1,128)}', space=vmem, size = 0x12000, scoped, tag = 'internal scratch']
  %s0 = inlined_call_operand.vmem [shape: bf16[256,256], index: 0, kind: input, shape index: {}]
  %s1 = inlined_call_operand.vmem [shape: bf16[256,128], index: 1, kind: input, shape index: {}]
  %s2 = inlined_call_operand.vmem [shape: f32[1,128], index: 2, kind: input, shape index: {}]
  %s3 = inlined_call_operand.vmem [shape: bf16[128,256], index: 3, kind: input, shape index: {}]
  %s4 = inlined_call_operand.vmem [shape: f32[1,256], index: 4, kind: input, shape index: {}]
  %s5 = inlined_call_operand.hbm [shape: f32[256,256], index: 5, kind: output, shape index: {}]
  %s6 = sld [smem:[#allocation0]]
  $region53: #{autoencoder_forward.1} parent=0
    _
  %s8 = ssub.s32 1, %s6
  %s9 = scalar_select 0, %s8, %s6
  $region1: #{autoencoder_forward.1} parent=0
    #allocation2 [shape = 'u8[262144]{0}', space=vmem, size = 0x40000, scoped, tag = 'output window, operand 0']
    #allocation3 [shape = 's32[2]{0}', space=sflag, size = 0x8, scoped, tag = 'scoped memory for autoencoder_forward.1']
    %10 = vsyncpa [#allocation3], 0
    %s11 = scalar_lea.sflag [#allocation3], 1
    %12 = vsyncpa %s11, 0
    loop: start=0, step=1, limit=4
    $region2: #{autoencoder_forward.1} parent=1 // loop_pre_header
      _
    $region3: #{autoencoder_forward.1} parent=1 // loop_header
      %s14 = sphi 0, %s18
      %p15 = scmp.ge.s32.totalorder %s14, 4
      %s24 = sphi 0, %s26
      %s27 = sphi 0, %s24
      %s28 = sphi 0, %s27
      %s44 = sphi 0, %s28
      %s48 = sphi 0, %s48
      %s50 = sphi 0, %s48
      %s51 = sphi 0, %s50
      %s65 = sphi 0, %s51
      %s69 = sphi 0, %s69
      %s71 = sphi 0, %s69
      %s72 = sphi 0, %s71
      %s86 = sphi 0, %s72
      %s90 = sphi 0, %s90
      %s92 = sphi 0, %s90
      %s93 = sphi 0, %s92
      %s107 = sphi 0, %s93
      %s111 = sphi 0, %s111
      %s113 = sphi 0, %s111
      %s114 = sphi 0, %s113
      %s128 = sphi 0, %s114
      %s134 = sphi 0, %s136
      %s137 = sphi 0, %s134
      %s138 = sphi 0, %s137
      %s154 = sphi 0, %s138
    $region4: #{autoencoder_forward.1} parent=1 // loop_header_branch
      %17 = sbr.rel (%p15) target = $region8
    $region5: #{autoencoder_forward.1} parent=1 // loop_body
      %s19 = ssub.s32 %s14, 1
      %s20 = ssub.s32 %s14, 2
      %s21 = sadd.s32 %s14, 1
      %s22 = ssub.s32 %s14, %s21
      %p23 = scmp.eq.s32.totalorder %s22, 0
      %s25 = sadd.s32 %s24, 1
      %s26 = scalar_select %p23, %s24, %s25
      %p29 = pneg %p23
      %p30 = scmp.eq.s32.totalorder %s14, 1
      %p31 = por %p29, %p30
      %p32 = scmp.ne.s32.totalorder %s24, %s27
      %p33 = scmp.eq.s32.totalorder %s14, 0
      %p34 = por %p32, %p33
      %p35 = scmp.ne.s32.totalorder %s24, %s27
      %p36 = scmp.eq.s32.totalorder %s19, 1
      %p37 = por %p35, %p36
      %p38 = scmp.ne.s32.totalorder %s27, %s28
      %p39 = scmp.eq.s32.totalorder %s19, 0
      %p40 = por %p38, %p39
      %p41 = scmp.ne.s32.totalorder %s27, %s28
      %p42 = scmp.eq.s32.totalorder %s20, 1
      %p43 = por %p41, %p42
      %p45 = scmp.ne.s32.totalorder %s28, %s44
      %p46 = scmp.eq.s32.totalorder %s20, 0
      %p47 = por %p45, %p46
      %s49 = sadd.s32 %s48, 1
      %p52 = scmp.eq.s32.totalorder %s14, 1
      %p53 = scmp.ne.s32.totalorder %s48, %s50
      %p54 = scmp.eq.s32.totalorder %s14, 0
      %p55 = por %p53, %p54
      %p56 = scmp.ne.s32.totalorder %s48, %s50
      %p57 = scmp.eq.s32.totalorder %s19, 1
      %p58 = por %p56, %p57
      %p59 = scmp.ne.s32.totalorder %s50, %s51
      %p60 = scmp.eq.s32.totalorder %s19, 0
      %p61 = por %p59, %p60
      %p62 = scmp.ne.s32.totalorder %s50, %s51
      %p63 = scmp.eq.s32.totalorder %s20, 1
      %p64 = por %p62, %p63
      %p66 = scmp.ne.s32.totalorder %s51, %s65
      %p67 = scmp.eq.s32.totalorder %s20, 0
      %p68 = por %p66, %p67
      %s70 = sadd.s32 %s69, 1
      %p73 = scmp.eq.s32.totalorder %s14, 1
      %p74 = scmp.ne.s32.totalorder %s69, %s71
      %p75 = scmp.eq.s32.totalorder %s14, 0
      %p76 = por %p74, %p75
      %p77 = scmp.ne.s32.totalorder %s69, %s71
      %p78 = scmp.eq.s32.totalorder %s19, 1
      %p79 = por %p77, %p78
      %p80 = scmp.ne.s32.totalorder %s71, %s72
      %p81 = scmp.eq.s32.totalorder %s19, 0
      %p82 = por %p80, %p81
      %p83 = scmp.ne.s32.totalorder %s71, %s72
      %p84 = scmp.eq.s32.totalorder %s20, 1
      %p85 = por %p83, %p84
      %p87 = scmp.ne.s32.totalorder %s72, %s86
      %p88 = scmp.eq.s32.totalorder %s20, 0
      %p89 = por %p87, %p88
      %s91 = sadd.s32 %s90, 1
      %p94 = scmp.eq.s32.totalorder %s14, 1
      %p95 = scmp.ne.s32.totalorder %s90, %s92
      %p96 = scmp.eq.s32.totalorder %s14, 0
      %p97 = por %p95, %p96
      %p98 = scmp.ne.s32.totalorder %s90, %s92
      %p99 = scmp.eq.s32.totalorder %s19, 1
      %p100 = por %p98, %p99
      %p101 = scmp.ne.s32.totalorder %s92, %s93
      %p102 = scmp.eq.s32.totalorder %s19, 0
      %p103 = por %p101, %p102
      %p104 = scmp.ne.s32.totalorder %s92, %s93
      %p105 = scmp.eq.s32.totalorder %s20, 1
      %p106 = por %p104, %p105
      %p108 = scmp.ne.s32.totalorder %s93, %s107
      %p109 = scmp.eq.s32.totalorder %s20, 0
      %p110 = por %p108, %p109
      %s112 = sadd.s32 %s111, 1
      %p115 = scmp.eq.s32.totalorder %s14, 1
      %p116 = scmp.ne.s32.totalorder %s111, %s113
      %p117 = scmp.eq.s32.totalorder %s14, 0
      %p118 = por %p116, %p117
      %p119 = scmp.ne.s32.totalorder %s111, %s113
      %p120 = scmp.eq.s32.totalorder %s19, 1
      %p121 = por %p119, %p120
      %p122 = scmp.ne.s32.totalorder %s113, %s114
      %p123 = scmp.eq.s32.totalorder %s19, 0
      %p124 = por %p122, %p123
      %p125 = scmp.ne.s32.totalorder %s113, %s114
      %p126 = scmp.eq.s32.totalorder %s20, 1
      %p127 = por %p125, %p126
      %p129 = scmp.ne.s32.totalorder %s114, %s128
      %p130 = scmp.eq.s32.totalorder %s20, 0
      %p131 = por %p129, %p130
      %s132 = ssub.s32 %s14, %s21
      %p133 = scmp.eq.s32.totalorder %s132, 0
      %s135 = sadd.s32 %s134, 1
      %s136 = scalar_select %p133, %s134, %s135
      %p139 = pneg %p133
      %p140 = scmp.eq.s32.totalorder %s14, 1
      %p141 = por %p139, %p140
      %p142 = scmp.ne.s32.totalorder %s134, %s137
      %p143 = scmp.eq.s32.totalorder %s14, 0
      %p144 = por %p142, %p143
      %p145 = scmp.ne.s32.totalorder %s134, %s137
      %p146 = scmp.eq.s32.totalorder %s19, 1
      %p147 = por %p145, %p146
      %p148 = scmp.ne.s32.totalorder %s137, %s138
      %p149 = scmp.eq.s32.totalorder %s19, 0
      %p150 = por %p148, %p149
      %p151 = scmp.ne.s32.totalorder %s137, %s138
      %p152 = scmp.eq.s32.totalorder %s20, 1
      %p153 = por %p151, %p152
      %p155 = scmp.ne.s32.totalorder %s138, %s154
      %p156 = scmp.eq.s32.totalorder %s20, 0
      %p157 = por %p155, %p156
      %p158 = scmp.le.s32.totalorder 1, %s14
      %p159 = scmp.lt.s32.totalorder %s14, 3
      %p160 = pnand %p158, %p159
      %p161 = pneg %p160
      // Predicated region
      $region9: #{autoencoder_forward.1} parent=5 // pred_check
        _
      $region10: #{autoencoder_forward.1} parent=5 // pred_check_branch
        %163 = sbr.rel (%p160) target = $region12
      $region11: #{autoencoder_forward.1} parent=5 // pred_region
        %s164 = ssub.s32 %s14, 1
        // Predicated region
        $region13: #{autoencoder_forward.1} parent=11 // pred_check
          %p165 = pneg %p61
        $region14: #{autoencoder_forward.1} parent=11 // pred_check_branch
          %167 = sbr.rel (%p165) target = $region16
        $region15: #{autoencoder_forward.1} parent=11 // pred_region
          _
        $region16: #{autoencoder_forward.1} parent=11 // pred_fallthru
          _
        // Predicated region
        $region17: #{autoencoder_forward.1} parent=11 // pred_check
          %p168 = pneg %p82
        $region18: #{autoencoder_forward.1} parent=11 // pred_check_branch
          %170 = sbr.rel (%p168) target = $region20
        $region19: #{autoencoder_forward.1} parent=11 // pred_region
          _
        $region20: #{autoencoder_forward.1} parent=11 // pred_fallthru
          _
        // Predicated region
        $region21: #{autoencoder_forward.1} parent=11 // pred_check
          %p171 = pneg %p103
        $region22: #{autoencoder_forward.1} parent=11 // pred_check_branch
          %173 = sbr.rel (%p171) target = $region24
        $region23: #{autoencoder_forward.1} parent=11 // pred_region
          _
        $region24: #{autoencoder_forward.1} parent=11 // pred_fallthru
          _
        // Predicated region
        $region25: #{autoencoder_forward.1} parent=11 // pred_check
          %p174 = pneg %p124
        $region26: #{autoencoder_forward.1} parent=11 // pred_check_branch
          %176 = sbr.rel (%p174) target = $region28
        $region27: #{autoencoder_forward.1} parent=11 // pred_region
          _
        $region28: #{autoencoder_forward.1} parent=11 // pred_fallthru
          _
      $region12: #{autoencoder_forward.1} parent=5 // pred_fallthru
        _
      %p177 = scmp.lt.s32.totalorder %s14, 2
      // Predicated region
      $region29: #{autoencoder_forward.1} parent=5 // pred_check
        %p178 = pneg %p177
      $region30: #{autoencoder_forward.1} parent=5 // pred_check_branch
        %180 = sbr.rel (%p178) target = $region32
      $region31: #{autoencoder_forward.1} parent=5 // pred_region
        // Predicated region
        $region33: #{autoencoder_forward.1} parent=31 // pred_check
          %p181 = pneg %p34
        $region34: #{autoencoder_forward.1} parent=31 // pred_check_branch
          %183 = sbr.rel (%p181) target = $region36
        $region35: #{autoencoder_forward.1} parent=31 // pred_region
          %s184 = smul.u32 16, %s14
          %p185 = scmp.lt.s32.totalorder %s184, 31
          %s186 = scalar_select %p185, %s184, 31
          %s187 = smul.addr %s186, 2
          %s188 = smul.addr %s187, 4
          %s189 = scalar_lea.vmem %s0, %s188
          %s190 = smul.u32 16, %s14
        $region36: #{autoencoder_forward.1} parent=31 // pred_fallthru
          _
      $region32: #{autoencoder_forward.1} parent=5 // pred_fallthru
        _
      %p191 = scmp.le.s32.totalorder 1, %s14
      %p192 = scmp.lt.s32.totalorder %s14, 3
      %p193 = pnand %p191, %p192
      %p194 = pneg %p193
      // Predicated region
      $region37: #{autoencoder_forward.1} parent=5 // pred_check
        _
      $region38: #{autoencoder_forward.1} parent=5 // pred_check_branch
        %196 = sbr.rel (%p193) target = $region40
      $region39: #{autoencoder_forward.1} parent=5 // pred_region
        %s197 = ssub.s32 %s14, 1
        %s198 = smul.u32 16, %s19
        %p199 = scmp.lt.s32.totalorder %s198, 31
        %s200 = scalar_select %p199, %s198, 31
        %s201 = smul.addr %s200, 2
        %s202 = smul.addr %s201, 4
        %s203 = scalar_lea.vmem %s0, %s202
        %p204 = pneg %p40
        %p205 = pneg %p37
        %p206 = pneg %p61
        %p207 = pneg %p58
        %p208 = pneg %p82
        %p209 = pneg %p79
        %p210 = pneg %p103
        %p211 = pneg %p100
        %p212 = pneg %p124
        %p213 = pneg %p121
        %p214 = pneg %p150
        %p215 = pneg %p147
        %s216 = sand.u32 %s137, 1
        %s217 = scalar_lea.sflag [#allocation3], %s216
        %s218 = sand.u32 %s137, 1
        %s219 = smul.addr %s218, 256
        %s220 = scalar_lea.vmem [#allocation2], %s219
        %s221 = smul.u32 16, %s19
        %p222 = scmp.lt.s32.totalorder %s221, 31
        %s223 = scalar_select %p222, %s221, 31
        %s224 = smul.addr %s223, 2
        %s225 = smul.addr %s224, 4
        %s226 = scalar_lea.vmem %s0, %s225
        %s227 = smul.u32 16, %s19
        %s228 = smul.u32 16, %s19
        %v230 = vld [vmem:[%s226] sm:$0xff]
        %v231 = vld [vmem:[%s226 + $0x8] sm:$0xff]
        %v232 = vld [vmem:[%s226 + $0x10] sm:$0xff]
        %v233 = vld [vmem:[%s226 + $0x18] sm:$0xff]
        %v234 = vld [vmem:[%s226 + $0x20] sm:$0xff]
        %v235 = vld [vmem:[%s226 + $0x28] sm:$0xff]
        %v236 = vld [vmem:[%s226 + $0x30] sm:$0xff]
        %v237 = vld [vmem:[%s226 + $0x38] sm:$0xff]
        %v238 = vld [vmem:[%s226 + $0x40] sm:$0xff]
        %v239 = vld [vmem:[%s226 + $0x48] sm:$0xff]
        %v240 = vld [vmem:[%s226 + $0x50] sm:$0xff]
        %v241 = vld [vmem:[%s226 + $0x58] sm:$0xff]
        %v242 = vld [vmem:[%s226 + $0x60] sm:$0xff]
        %v243 = vld [vmem:[%s226 + $0x68] sm:$0xff]
        %v244 = vld [vmem:[%s226 + $0x70] sm:$0xff]
        %v245 = vld [vmem:[%s226 + $0x78] sm:$0xff]
        %v246 = vld [vmem:[%s1] sm:$0xf]
        %v247 = vld [vmem:[%s1 + $0x4] sm:$0xf]
        %v248 = vld [vmem:[%s1 + $0x8] sm:$0xf]
        %v249 = vld [vmem:[%s1 + $0xc] sm:$0xf]
        %v250 = vld [vmem:[%s1 + $0x10] sm:$0xf]
        %v251 = vld [vmem:[%s1 + $0x14] sm:$0xf]
        %v252 = vld [vmem:[%s1 + $0x18] sm:$0xf]
        %v253 = vld [vmem:[%s1 + $0x1c] sm:$0xf]
        %v254 = vld [vmem:[%s1 + $0x20] sm:$0xf]
        %v255 = vld [vmem:[%s1 + $0x24] sm:$0xf]
        %v256 = vld [vmem:[%s1 + $0x28] sm:$0xf]
        %v257 = vld [vmem:[%s1 + $0x2c] sm:$0xf]
        %v258 = vld [vmem:[%s1 + $0x30] sm:$0xf]
        %v259 = vld [vmem:[%s1 + $0x34] sm:$0xf]
        %v260 = vld [vmem:[%s1 + $0x38] sm:$0xf]
        %v261 = vld [vmem:[%s1 + $0x3c] sm:$0xf]
        %v262 = vld [vmem:[%s1 + $0x40] sm:$0xf]
        %v263 = vld [vmem:[%s1 + $0x44] sm:$0xf]
        %v264 = vld [vmem:[%s1 + $0x48] sm:$0xf]
        %v265 = vld [vmem:[%s1 + $0x4c] sm:$0xf]
        %v266 = vld [vmem:[%s1 + $0x50] sm:$0xf]
        %v267 = vld [vmem:[%s1 + $0x54] sm:$0xf]
        %v268 = vld [vmem:[%s1 + $0x58] sm:$0xf]
        %v269 = vld [vmem:[%s1 + $0x5c] sm:$0xf]
        %v270 = vld [vmem:[%s1 + $0x60] sm:$0xf]
        %v271 = vld [vmem:[%s1 + $0x64] sm:$0xf]
        %v272 = vld [vmem:[%s1 + $0x68] sm:$0xf]
        %v273 = vld [vmem:[%s1 + $0x6c] sm:$0xf]
        %v274 = vld [vmem:[%s1 + $0x70] sm:$0xf]
        %v275 = vld [vmem:[%s1 + $0x74] sm:$0xf]
        %v276 = vld [vmem:[%s1 + $0x78] sm:$0xf]
        %v277 = vld [vmem:[%s1 + $0x7c] sm:$0xf]
        %v278 = vld [vmem:[%s2] sm:$0x1]
        %v280 = vlaneseq
        %v281 = vshrl.u32 %v280, 7
        %v282 = vsub.s32 0, %v281
        %v283 = vrot.slane %v278, %v282
        %v301 = vunpack.c.l.b16 %v230
        %v302 = vunpack.c.h.b16 %v230
        %v303 = vunpack.c.l.b16 %v231
        %v304 = vunpack.c.h.b16 %v231
        %v305 = vunpack.c.l.b16 %v232
        %v306 = vunpack.c.h.b16 %v232
        %v307 = vunpack.c.l.b16 %v233
        %v308 = vunpack.c.h.b16 %v233
        %v309 = vunpack.c.l.b16 %v234
        %v310 = vunpack.c.h.b16 %v234
        %v311 = vunpack.c.l.b16 %v235
        %v312 = vunpack.c.h.b16 %v235
        %v313 = vunpack.c.l.b16 %v236
        %v314 = vunpack.c.h.b16 %v236
        %v315 = vunpack.c.l.b16 %v237
        %v316 = vunpack.c.h.b16 %v237
        %v317 = vunpack.c.l.b16 %v238
        %v318 = vunpack.c.h.b16 %v238
        %v319 = vunpack.c.l.b16 %v239
        %v320 = vunpack.c.h.b16 %v239
        %v321 = vunpack.c.l.b16 %v240
        %v322 = vunpack.c.h.b16 %v240
        %v323 = vunpack.c.l.b16 %v241
        %v324 = vunpack.c.h.b16 %v241
        %v325 = vunpack.c.l.b16 %v242
        %v326 = vunpack.c.h.b16 %v242
        %v327 = vunpack.c.l.b16 %v243
        %v328 = vunpack.c.h.b16 %v243
        %v329 = vunpack.c.l.b16 %v244
        %v330 = vunpack.c.h.b16 %v244
        %v331 = vunpack.c.l.b16 %v245
        %v332 = vunpack.c.h.b16 %v245
        %v333 = vpack.c.b16 %v303, %v301
        %v334 = vpack.c.b16 %v304, %v302
        %v335 = vpack.c.b16 %v307, %v305
        %v336 = vpack.c.b16 %v308, %v306
        %v337 = vpack.c.b16 %v311, %v309
        %v338 = vpack.c.b16 %v312, %v310
        %v339 = vpack.c.b16 %v315, %v313
        %v340 = vpack.c.b16 %v316, %v314
        %v341 = vpack.c.b16 %v319, %v317
        %v342 = vpack.c.b16 %v320, %v318
        %v343 = vpack.c.b16 %v323, %v321
        %v344 = vpack.c.b16 %v324, %v322
        %v345 = vpack.c.b16 %v327, %v325
        %v346 = vpack.c.b16 %v328, %v326
        %v347 = vpack.c.b16 %v331, %v329
        %v348 = vpack.c.b16 %v332, %v330
        %v397 = vunpack.c.l.b16 %v246
        %v398 = vunpack.c.l.b16 %v247
        %v399 = vunpack.c.l.b16 %v248
        %v400 = vunpack.c.l.b16 %v249
        %v401 = vunpack.c.l.b16 %v250
        %v402 = vunpack.c.l.b16 %v251
        %v403 = vunpack.c.l.b16 %v252
        %v404 = vunpack.c.l.b16 %v253
        %v405 = vunpack.c.l.b16 %v254
        %v406 = vunpack.c.l.b16 %v255
        %v407 = vunpack.c.l.b16 %v256
        %v408 = vunpack.c.l.b16 %v257
        %v409 = vunpack.c.l.b16 %v258
        %v410 = vunpack.c.l.b16 %v259
        %v411 = vunpack.c.l.b16 %v260
        %v412 = vunpack.c.l.b16 %v261
        %v413 = vunpack.c.l.b16 %v262
        %v414 = vunpack.c.l.b16 %v263
        %v415 = vunpack.c.l.b16 %v264
        %v416 = vunpack.c.l.b16 %v265
        %v417 = vunpack.c.l.b16 %v266
        %v418 = vunpack.c.l.b16 %v267
        %v419 = vunpack.c.l.b16 %v268
        %v420 = vunpack.c.l.b16 %v269
        %v421 = vunpack.c.l.b16 %v270
        %v422 = vunpack.c.l.b16 %v271
        %v423 = vunpack.c.l.b16 %v272
        %v424 = vunpack.c.l.b16 %v273
        %v425 = vunpack.c.l.b16 %v274
        %v426 = vunpack.c.l.b16 %v275
        %v427 = vunpack.c.l.b16 %v276
        %v428 = vunpack.c.l.b16 %v277
        %v429 = vpack.c.b16 %v398, %v397
        %v430 = vpack.c.b16 %v400, %v399
        %v431 = vpack.c.b16 %v402, %v401
        %v432 = vpack.c.b16 %v404, %v403
        %v433 = vpack.c.b16 %v406, %v405
        %v434 = vpack.c.b16 %v408, %v407
        %v435 = vpack.c.b16 %v410, %v409
        %v436 = vpack.c.b16 %v412, %v411
        %v437 = vpack.c.b16 %v414, %v413
        %v438 = vpack.c.b16 %v416, %v415
        %v439 = vpack.c.b16 %v418, %v417
        %v440 = vpack.c.b16 %v420, %v419
        %v441 = vpack.c.b16 %v422, %v421
        %v442 = vpack.c.b16 %v424, %v423
        %v443 = vpack.c.b16 %v426, %v425
        %v444 = vpack.c.b16 %v428, %v427
        %461 = vmatprep.subr.bf16.mxu0 0
        %462 = vmatpush1.bf16.msra.mxu0 %v429
        %463 = vmatprep.subr.bf16.mxu0 0
        %464 = vmatpush1.bf16.msra.mxu0 %v430
        %465 = vmatprep.subr.bf16.mxu0 0
        %466 = vmatpush1.bf16.msra.mxu0 %v431
        %467 = vmatprep.subr.bf16.mxu0 0
        %468 = vmatpush1.bf16.msra.mxu0 %v432
        %469 = vmatprep.subr.bf16.mxu0 0
        %470 = vmatpush1.bf16.msra.mxu0 %v433
        %471 = vmatprep.subr.bf16.mxu0 0
        %472 = vmatpush1.bf16.msra.mxu0 %v434
        %473 = vmatprep.subr.bf16.mxu0 0
        %474 = vmatpush1.bf16.msra.mxu0 %v435
        %475 = vmatprep.subr.bf16.mxu0 0
        %476 = vmatpush1.bf16.msra.mxu0 %v436
        %477 = vmatprep.subr.bf16.mxu0 0
        %478 = vmatpush1.bf16.msra.mxu0 %v437
        %479 = vmatprep.subr.bf16.mxu0 0
        %480 = vmatpush1.bf16.msra.mxu0 %v438
        %481 = vmatprep.subr.bf16.mxu0 0
        %482 = vmatpush1.bf16.msra.mxu0 %v439
        %483 = vmatprep.subr.bf16.mxu0 0
        %484 = vmatpush1.bf16.msra.mxu0 %v440
        %485 = vmatprep.subr.bf16.mxu0 0
        %486 = vmatpush1.bf16.msra.mxu0 %v441
        %487 = vmatprep.subr.bf16.mxu0 0
        %488 = vmatpush1.bf16.msra.mxu0 %v442
        %489 = vmatprep.subr.bf16.mxu0 0
        %490 = vmatpush1.bf16.msra.mxu0 %v443
        %491 = vmatprep.subr.bf16.mxu0 0
        %492 = vmatpush1.bf16.msra.mxu0 %v444
        %493 = vmatprep.mubr.bf16.mxu0 %v334
        %494 = vmatmul.mubr.bf16.gmra.mrb[0].mxu0 %v333
        %v495 = vpop.f32.mrb[0].mxu0
        %v496 = vadd.f32 %v283, %v495
        %v497 = vpop.f32.mrb[0].mxu0
        %v498 = vpop.f32.mrb[0].mxu0
        %v499 = vadd.f32 %v283, %v498
        %v500 = vpop.f32.mrb[0].mxu0
        %501 = vmatprep.mubr.bf16.mxu0 %v336
        %502 = vmatmul.mubr.bf16.gmra.mrb[0].mxu0 %v335
        %v503 = vpop.f32.mrb[0].mxu0
        %v504 = vadd.f32 %v283, %v503
        %v505 = vpop.f32.mrb[0].mxu0
        %v506 = vpop.f32.mrb[0].mxu0
        %v507 = vadd.f32 %v283, %v506
        %v508 = vpop.f32.mrb[0].mxu0
        %509 = vmatprep.mubr.bf16.mxu0 %v338
        %510 = vmatmul.mubr.bf16.gmra.mrb[0].mxu0 %v337
        %v511 = vpop.f32.mrb[0].mxu0
        %v512 = vadd.f32 %v283, %v511
        %v513 = vpop.f32.mrb[0].mxu0
        %v514 = vpop.f32.mrb[0].mxu0
        %v515 = vadd.f32 %v283, %v514
        %v516 = vpop.f32.mrb[0].mxu0
        %517 = vmatprep.mubr.bf16.mxu0 %v340
        %518 = vmatmul.mubr.bf16.gmra.mrb[0].mxu0 %v339
        %v519 = vpop.f32.mrb[0].mxu0
        %v520 = vadd.f32 %v283, %v519
        %v521 = vpop.f32.mrb[0].mxu0
        %v522 = vpop.f32.mrb[0].mxu0
        %v523 = vadd.f32 %v283, %v522
        %v524 = vpop.f32.mrb[0].mxu0
        %525 = vmatprep.mubr.bf16.mxu0 %v342
        %526 = vmatmul.mubr.bf16.gmra.mrb[0].mxu0 %v341
        %v527 = vpop.f32.mrb[0].mxu0
        %v528 = vadd.f32 %v283, %v527
        %v529 = vpop.f32.mrb[0].mxu0
        %v530 = vpop.f32.mrb[0].mxu0
        %v531 = vadd.f32 %v283, %v530
        %v532 = vpop.f32.mrb[0].mxu0
        %533 = vmatprep.mubr.bf16.mxu0 %v344
        %534 = vmatmul.mubr.bf16.gmra.mrb[0].mxu0 %v343
        %v535 = vpop.f32.mrb[0].mxu0
        %v536 = vadd.f32 %v283, %v535
        %v537 = vpop.f32.mrb[0].mxu0
        %v538 = vpop.f32.mrb[0].mxu0
        %v539 = vadd.f32 %v283, %v538
        %v540 = vpop.f32.mrb[0].mxu0
        %541 = vmatprep.mubr.bf16.mxu0 %v346
        %542 = vmatmul.mubr.bf16.gmra.mrb[0].mxu0 %v345
        %v543 = vpop.f32.mrb[0].mxu0
        %v544 = vadd.f32 %v283, %v543
        %v545 = vpop.f32.mrb[0].mxu0
        %v546 = vpop.f32.mrb[0].mxu0
        %v547 = vadd.f32 %v283, %v546
        %v548 = vpop.f32.mrb[0].mxu0
        %549 = vmatprep.mubr.bf16.mxu0 %v348
        %550 = vmatmul.mubr.bf16.gmra.mrb[0].mxu0 %v347
        %v551 = vpop.f32.mrb[0].mxu0
        %v552 = vadd.f32 %v283, %v551
        %v553 = vpop.f32.mrb[0].mxu0
        %v554 = vpop.f32.mrb[0].mxu0
        %v555 = vadd.f32 %v283, %v554
        %v556 = vpop.f32.mrb[0].mxu0
        %557 = vdwg.mxu0
        %v558 = vxor.u32 %v496, 2147483648
        %v559 = vxor.u32 %v499, 2147483648
        %v560 = vxor.u32 %v504, 2147483648
        %v561 = vxor.u32 %v507, 2147483648
        %v562 = vxor.u32 %v512, 2147483648
        %v563 = vxor.u32 %v515, 2147483648
        %v564 = vxor.u32 %v520, 2147483648
        %v565 = vxor.u32 %v523, 2147483648
        %v566 = vxor.u32 %v528, 2147483648
        %v567 = vxor.u32 %v531, 2147483648
        %v568 = vxor.u32 %v536, 2147483648
        %v569 = vxor.u32 %v539, 2147483648
        %v570 = vxor.u32 %v544, 2147483648
        %v571 = vxor.u32 %v547, 2147483648
        %v572 = vxor.u32 %v552, 2147483648
        %v573 = vxor.u32 %v555, 2147483648
        %v574 = vmul.f32 %v558, 1.442695
        %v575 = vpow.pop %v574
        %v576 = vmul.f32 %v559, 1.442695
        %v577 = vpow.pop %v576
        %v578 = vmul.f32 %v560, 1.442695
        %v579 = vpow.pop %v578
        %v580 = vmul.f32 %v561, 1.442695
        %v581 = vpow.pop %v580
        %v582 = vmul.f32 %v562, 1.442695
        %v583 = vpow.pop %v582
        %v584 = vmul.f32 %v563, 1.442695
        %v585 = vpow.pop %v584
        %v586 = vmul.f32 %v564, 1.442695
        %v587 = vpow.pop %v586
        %v588 = vmul.f32 %v565, 1.442695
        %v589 = vpow.pop %v588
        %v590 = vmul.f32 %v566, 1.442695
        %v591 = vpow.pop %v590
        %v592 = vmul.f32 %v567, 1.442695
        %v593 = vpow.pop %v592
        %v594 = vmul.f32 %v568, 1.442695
        %v595 = vpow.pop %v594
        %v596 = vmul.f32 %v569, 1.442695
        %v597 = vpow.pop %v596
        %v598 = vmul.f32 %v570, 1.442695
        %v599 = vpow.pop %v598
        %v600 = vmul.f32 %v571, 1.442695
        %v601 = vpow.pop %v600
        %v602 = vmul.f32 %v572, 1.442695
        %v603 = vpow.pop %v602
        %v604 = vmul.f32 %v573, 1.442695
        %v605 = vpow.pop %v604
        %v606 = vadd.f32 %v575, 1.0
        %v607 = vadd.f32 %v577, 1.0
        %v608 = vadd.f32 %v579, 1.0
        %v609 = vadd.f32 %v581, 1.0
        %v610 = vadd.f32 %v583, 1.0
        %v611 = vadd.f32 %v585, 1.0
        %v612 = vadd.f32 %v587, 1.0
        %v613 = vadd.f32 %v589, 1.0
        %v614 = vadd.f32 %v591, 1.0
        %v615 = vadd.f32 %v593, 1.0
        %v616 = vadd.f32 %v595, 1.0
        %v617 = vadd.f32 %v597, 1.0
        %v618 = vadd.f32 %v599, 1.0
        %v619 = vadd.f32 %v601, 1.0
        %v620 = vadd.f32 %v603, 1.0
        %v621 = vadd.f32 %v605, 1.0
        %v622 = vrcp.pop %v606
        %v623 = vmul.f32 1.0, %v622
        %v624 = vrcp.pop %v607
        %v625 = vmul.f32 1.0, %v624
        %v626 = vrcp.pop %v608
        %v627 = vmul.f32 1.0, %v626
        %v628 = vrcp.pop %v609
        %v629 = vmul.f32 1.0, %v628
        %v630 = vrcp.pop %v610
        %v631 = vmul.f32 1.0, %v630
        %v632 = vrcp.pop %v611
        %v633 = vmul.f32 1.0, %v632
        %v634 = vrcp.pop %v612
        %v635 = vmul.f32 1.0, %v634
        %v636 = vrcp.pop %v613
        %v637 = vmul.f32 1.0, %v636
        %v638 = vrcp.pop %v614
        %v639 = vmul.f32 1.0, %v638
        %v640 = vrcp.pop %v615
        %v641 = vmul.f32 1.0, %v640
        %v642 = vrcp.pop %v616
        %v643 = vmul.f32 1.0, %v642
        %v644 = vrcp.pop %v617
        %v645 = vmul.f32 1.0, %v644
        %v646 = vrcp.pop %v618
        %v647 = vmul.f32 1.0, %v646
        %v648 = vrcp.pop %v619
        %v649 = vmul.f32 1.0, %v648
        %v650 = vrcp.pop %v620
        %v651 = vmul.f32 1.0, %v650
        %v652 = vrcp.pop %v621
        %v653 = vmul.f32 1.0, %v652
        %v654 = vpack.c.bf16 %v625, %v623
        %v655 = vpack.c.bf16 %v629, %v627
        %v656 = vpack.c.bf16 %v633, %v631
        %v657 = vpack.c.bf16 %v637, %v635
        %v658 = vpack.c.bf16 %v641, %v639
        %v659 = vpack.c.bf16 %v645, %v643
        %v660 = vpack.c.bf16 %v649, %v647
        %v661 = vpack.c.bf16 %v653, %v651
        %v662 = vld [vmem:[%s3] sm:$0xff]
        %v663 = vld [vmem:[%s3 + $0x8] sm:$0xff]
        %v664 = vld [vmem:[%s3 + $0x10] sm:$0xff]
        %v665 = vld [vmem:[%s3 + $0x18] sm:$0xff]
        %v666 = vld [vmem:[%s3 + $0x20] sm:$0xff]
        %v667 = vld [vmem:[%s3 + $0x28] sm:$0xff]
        %v668 = vld [vmem:[%s3 + $0x30] sm:$0xff]
        %v669 = vld [vmem:[%s3 + $0x38] sm:$0xff]
        %v670 = vld [vmem:[%s3 + $0x40] sm:$0xff]
        %v671 = vld [vmem:[%s3 + $0x48] sm:$0xff]
        %v672 = vld [vmem:[%s3 + $0x50] sm:$0xff]
        %v673 = vld [vmem:[%s3 + $0x58] sm:$0xff]
        %v674 = vld [vmem:[%s3 + $0x60] sm:$0xff]
        %v675 = vld [vmem:[%s3 + $0x68] sm:$0xff]
        %v676 = vld [vmem:[%s3 + $0x70] sm:$0xff]
        %v677 = vld [vmem:[%s3 + $0x78] sm:$0xff]
        %v678 = vld [vmem:[%s4] sm:$0x3]
        %v680 = vlaneseq
        %v681 = vshrl.u32 %v680, 7
        %v682 = vsub.s32 0, %v681
        %v683 = vrot.slane %v678, %v682
        %v684 = vlaneseq
        %v685 = vshrl.u32 %v684, 7
        %v686 = vsub.s32 1, %v685
        %v687 = vrot.slane %v678, %v686
        %v706 = vunpack.c.l.b16 %v662
        %v707 = vunpack.c.h.b16 %v662
        %v708 = vunpack.c.l.b16 %v663
        %v709 = vunpack.c.h.b16 %v663
        %v710 = vunpack.c.l.b16 %v664
        %v711 = vunpack.c.h.b16 %v664
        %v712 = vunpack.c.l.b16 %v665
        %v713 = vunpack.c.h.b16 %v665
        %v714 = vunpack.c.l.b16 %v666
        %v715 = vunpack.c.h.b16 %v666
        %v716 = vunpack.c.l.b16 %v667
        %v717 = vunpack.c.h.b16 %v667
        %v718 = vunpack.c.l.b16 %v668
        %v719 = vunpack.c.h.b16 %v668
        %v720 = vunpack.c.l.b16 %v669
        %v721 = vunpack.c.h.b16 %v669
        %v722 = vunpack.c.l.b16 %v670
        %v723 = vunpack.c.h.b16 %v670
        %v724 = vunpack.c.l.b16 %v671
        %v725 = vunpack.c.h.b16 %v671
        %v726 = vunpack.c.l.b16 %v672
        %v727 = vunpack.c.h.b16 %v672
        %v728 = vunpack.c.l.b16 %v673
        %v729 = vunpack.c.h.b16 %v673
        %v730 = vunpack.c.l.b16 %v674
        %v731 = vunpack.c.h.b16 %v674
        %v732 = vunpack.c.l.b16 %v675
        %v733 = vunpack.c.h.b16 %v675
        %v734 = vunpack.c.l.b16 %v676
        %v735 = vunpack.c.h.b16 %v676
        %v736 = vunpack.c.l.b16 %v677
        %v737 = vunpack.c.h.b16 %v677
        %v738 = vpack.c.b16 %v708, %v706
        %v739 = vpack.c.b16 %v709, %v707
        %v740 = vpack.c.b16 %v712, %v710
        %v741 = vpack.c.b16 %v713, %v711
        %v742 = vpack.c.b16 %v716, %v714
        %v743 = vpack.c.b16 %v717, %v715
        %v744 = vpack.c.b16 %v720, %v718
        %v745 = vpack.c.b16 %v721, %v719
        %v746 = vpack.c.b16 %v724, %v722
        %v747 = vpack.c.b16 %v725, %v723
        %v748 = vpack.c.b16 %v728, %v726
        %v749 = vpack.c.b16 %v729, %v727
        %v750 = vpack.c.b16 %v732, %v730
        %v751 = vpack.c.b16 %v733, %v731
        %v752 = vpack.c.b16 %v736, %v734
        %v753 = vpack.c.b16 %v737, %v735
        %770 = vmatprep.subr.bf16.mxu0 %v739
        %771 = vmatpush1.bf16.msra.mxu0 %v738
        %772 = vmatprep.subr.bf16.mxu0 %v741
        %773 = vmatpush1.bf16.msra.mxu0 %v740
        %774 = vmatprep.subr.bf16.mxu0 %v743
        %775 = vmatpush1.bf16.msra.mxu0 %v742
        %776 = vmatprep.subr.bf16.mxu0 %v745
        %777 = vmatpush1.bf16.msra.mxu0 %v744
        %778 = vmatprep.subr.bf16.mxu0 %v747
        %779 = vmatpush1.bf16.msra.mxu0 %v746
        %780 = vmatprep.subr.bf16.mxu0 %v749
        %781 = vmatpush1.bf16.msra.mxu0 %v748
        %782 = vmatprep.subr.bf16.mxu0 %v751
        %783 = vmatpush1.bf16.msra.mxu0 %v750
        %784 = vmatprep.subr.bf16.mxu0 %v753
        %785 = vmatpush1.bf16.msra.mxu0 %v752
        %786 = vmatprep.subr.bf16.mxu0 0
        %787 = vmatpush1.bf16.msra.mxu0 0
        %788 = vmatprep.subr.bf16.mxu0 0
        %789 = vmatpush1.bf16.msra.mxu0 0
        %790 = vmatprep.subr.bf16.mxu0 0
        %791 = vmatpush1.bf16.msra.mxu0 0
        %792 = vmatprep.subr.bf16.mxu0 0
        %793 = vmatpush1.bf16.msra.mxu0 0
        %794 = vmatprep.subr.bf16.mxu0 0
        %795 = vmatpush1.bf16.msra.mxu0 0
        %796 = vmatprep.subr.bf16.mxu0 0
        %797 = vmatpush1.bf16.msra.mxu0 0
        %798 = vmatprep.subr.bf16.mxu0 0
        %799 = vmatpush1.bf16.msra.mxu0 0
        %800 = vmatprep.subr.bf16.mxu0 0
        %801 = vmatpush1.bf16.msra.mxu0 0
        %802 = vmatprep.mubr.bf16.mxu0 0
        %803 = vmatmul.mubr.bf16.gmra.mrb[0].mxu0 %v654
        %v804 = vpop.f32.mrb[0].mxu0
        %v805 = vadd.f32 %v683, %v804
        %v806 = vpop.f32.mrb[0].mxu0
        %v807 = vadd.f32 %v687, %v806
        %v808 = vpop.f32.mrb[0].mxu0
        %v809 = vadd.f32 %v683, %v808
        %v810 = vpop.f32.mrb[0].mxu0
        %v811 = vadd.f32 %v687, %v810
        %812 = vmatprep.mubr.bf16.mxu0 0
        %813 = vmatmul.mubr.bf16.gmra.mrb[0].mxu0 %v655
        %v814 = vpop.f32.mrb[0].mxu0
        %v815 = vadd.f32 %v683, %v814
        %v816 = vpop.f32.mrb[0].mxu0
        %v817 = vadd.f32 %v687, %v816
        %v818 = vpop.f32.mrb[0].mxu0
        %v819 = vadd.f32 %v683, %v818
        %v820 = vpop.f32.mrb[0].mxu0
        %v821 = vadd.f32 %v687, %v820
        %822 = vmatprep.mubr.bf16.mxu0 0
        %823 = vmatmul.mubr.bf16.gmra.mrb[0].mxu0 %v656
        %v824 = vpop.f32.mrb[0].mxu0
        %v825 = vadd.f32 %v683, %v824
        %v826 = vpop.f32.mrb[0].mxu0
        %v827 = vadd.f32 %v687, %v826
        %v828 = vpop.f32.mrb[0].mxu0
        %v829 = vadd.f32 %v683, %v828
        %v830 = vpop.f32.mrb[0].mxu0
        %v831 = vadd.f32 %v687, %v830
        %832 = vmatprep.mubr.bf16.mxu0 0
        %833 = vmatmul.mubr.bf16.gmra.mrb[0].mxu0 %v657
        %v834 = vpop.f32.mrb[0].mxu0
        %v835 = vadd.f32 %v683, %v834
        %v836 = vpop.f32.mrb[0].mxu0
        %v837 = vadd.f32 %v687, %v836
        %v838 = vpop.f32.mrb[0].mxu0
        %v839 = vadd.f32 %v683, %v838
        %v840 = vpop.f32.mrb[0].mxu0
        %v841 = vadd.f32 %v687, %v840
        %842 = vmatprep.mubr.bf16.mxu0 0
        %843 = vmatmul.mubr.bf16.gmra.mrb[0].mxu0 %v658
        %v844 = vpop.f32.mrb[0].mxu0
        %v845 = vadd.f32 %v683, %v844
        %v846 = vpop.f32.mrb[0].mxu0
        %v847 = vadd.f32 %v687, %v846
        %v848 = vpop.f32.mrb[0].mxu0
        %v849 = vadd.f32 %v683, %v848
        %v850 = vpop.f32.mrb[0].mxu0
        %v851 = vadd.f32 %v687, %v850
        %852 = vmatprep.mubr.bf16.mxu0 0
        %853 = vmatmul.mubr.bf16.gmra.mrb[0].mxu0 %v659
        %v854 = vpop.f32.mrb[0].mxu0
        %v855 = vadd.f32 %v683, %v854
        %v856 = vpop.f32.mrb[0].mxu0
        %v857 = vadd.f32 %v687, %v856
        %v858 = vpop.f32.mrb[0].mxu0
        %v859 = vadd.f32 %v683, %v858
        %v860 = vpop.f32.mrb[0].mxu0
        %v861 = vadd.f32 %v687, %v860
        %862 = vmatprep.mubr.bf16.mxu0 0
        %863 = vmatmul.mubr.bf16.gmra.mrb[0].mxu0 %v660
        %v864 = vpop.f32.mrb[0].mxu0
        %v865 = vadd.f32 %v683, %v864
        %v866 = vpop.f32.mrb[0].mxu0
        %v867 = vadd.f32 %v687, %v866
        %v868 = vpop.f32.mrb[0].mxu0
        %v869 = vadd.f32 %v683, %v868
        %v870 = vpop.f32.mrb[0].mxu0
        %v871 = vadd.f32 %v687, %v870
        %872 = vmatprep.mubr.bf16.mxu0 0
        %873 = vmatmul.mubr.bf16.gmra.mrb[0].mxu0 %v661
        %v874 = vpop.f32.mrb[0].mxu0
        %v875 = vadd.f32 %v683, %v874
        %v876 = vpop.f32.mrb[0].mxu0
        %v877 = vadd.f32 %v687, %v876
        %v878 = vpop.f32.mrb[0].mxu0
        %v879 = vadd.f32 %v683, %v878
        %v880 = vpop.f32.mrb[0].mxu0
        %v881 = vadd.f32 %v687, %v880
        %882 = vdwg.mxu0
        %v883 = vxor.u32 %v805, 2147483648
        %v884 = vxor.u32 %v807, 2147483648
        %v885 = vxor.u32 %v809, 2147483648
        %v886 = vxor.u32 %v811, 2147483648
        %v887 = vxor.u32 %v815, 2147483648
        %v888 = vxor.u32 %v817, 2147483648
        %v889 = vxor.u32 %v819, 2147483648
        %v890 = vxor.u32 %v821, 2147483648
        %v891 = vxor.u32 %v825, 2147483648
        %v892 = vxor.u32 %v827, 2147483648
        %v893 = vxor.u32 %v829, 2147483648
        %v894 = vxor.u32 %v831, 2147483648
        %v895 = vxor.u32 %v835, 2147483648
        %v896 = vxor.u32 %v837, 2147483648
        %v897 = vxor.u32 %v839, 2147483648
        %v898 = vxor.u32 %v841, 2147483648
        %v899 = vxor.u32 %v845, 2147483648
        %v900 = vxor.u32 %v847, 2147483648
        %v901 = vxor.u32 %v849, 2147483648
        %v902 = vxor.u32 %v851, 2147483648
        %v903 = vxor.u32 %v855, 2147483648
        %v904 = vxor.u32 %v857, 2147483648
        %v905 = vxor.u32 %v859, 2147483648
        %v906 = vxor.u32 %v861, 2147483648
        %v907 = vxor.u32 %v865, 2147483648
        %v908 = vxor.u32 %v867, 2147483648
        %v909 = vxor.u32 %v869, 2147483648
        %v910 = vxor.u32 %v871, 2147483648
        %v911 = vxor.u32 %v875, 2147483648
        %v912 = vxor.u32 %v877, 2147483648
        %v913 = vxor.u32 %v879, 2147483648
        %v914 = vxor.u32 %v881, 2147483648
        %v915 = vmul.f32 %v883, 1.442695
        %v916 = vpow.pop %v915
        %v917 = vmul.f32 %v884, 1.442695
        %v918 = vpow.pop %v917
        %v919 = vmul.f32 %v885, 1.442695
        %v920 = vpow.pop %v919
        %v921 = vmul.f32 %v886, 1.442695
        %v922 = vpow.pop %v921
        %v923 = vmul.f32 %v887, 1.442695
        %v924 = vpow.pop %v923
        %v925 = vmul.f32 %v888, 1.442695
        %v926 = vpow.pop %v925
        %v927 = vmul.f32 %v889, 1.442695
        %v928 = vpow.pop %v927
        %v929 = vmul.f32 %v890, 1.442695
        %v930 = vpow.pop %v929
        %v931 = vmul.f32 %v891, 1.442695
        %v932 = vpow.pop %v931
        %v933 = vmul.f32 %v892, 1.442695
        %v934 = vpow.pop %v933
        %v935 = vmul.f32 %v893, 1.442695
        %v936 = vpow.pop %v935
        %v937 = vmul.f32 %v894, 1.442695
        %v938 = vpow.pop %v937
        %v939 = vmul.f32 %v895, 1.442695
        %v940 = vpow.pop %v939
        %v941 = vmul.f32 %v896, 1.442695
        %v942 = vpow.pop %v941
        %v943 = vmul.f32 %v897, 1.442695
        %v944 = vpow.pop %v943
        %v945 = vmul.f32 %v898, 1.442695
        %v946 = vpow.pop %v945
        %v947 = vmul.f32 %v899, 1.442695
        %v948 = vpow.pop %v947
        %v949 = vmul.f32 %v900, 1.442695
        %v950 = vpow.pop %v949
        %v951 = vmul.f32 %v901, 1.442695
        %v952 = vpow.pop %v951
        %v953 = vmul.f32 %v902, 1.442695
        %v954 = vpow.pop %v953
        %v955 = vmul.f32 %v903, 1.442695
        %v956 = vpow.pop %v955
        %v957 = vmul.f32 %v904, 1.442695
        %v958 = vpow.pop %v957
        %v959 = vmul.f32 %v905, 1.442695
        %v960 = vpow.pop %v959
        %v961 = vmul.f32 %v906, 1.442695
        %v962 = vpow.pop %v961
        %v963 = vmul.f32 %v907, 1.442695
        %v964 = vpow.pop %v963
        %v965 = vmul.f32 %v908, 1.442695
        %v966 = vpow.pop %v965
        %v967 = vmul.f32 %v909, 1.442695
        %v968 = vpow.pop %v967
        %v969 = vmul.f32 %v910, 1.442695
        %v970 = vpow.pop %v969
        %v971 = vmul.f32 %v911, 1.442695
        %v972 = vpow.pop %v971
        %v973 = vmul.f32 %v912, 1.442695
        %v974 = vpow.pop %v973
        %v975 = vmul.f32 %v913, 1.442695
        %v976 = vpow.pop %v975
        %v977 = vmul.f32 %v914, 1.442695
        %v978 = vpow.pop %v977
        %v979 = vadd.f32 %v916, 1.0
        %v980 = vadd.f32 %v918, 1.0
        %v981 = vadd.f32 %v920, 1.0
        %v982 = vadd.f32 %v922, 1.0
        %v983 = vadd.f32 %v924, 1.0
        %v984 = vadd.f32 %v926, 1.0
        %v985 = vadd.f32 %v928, 1.0
        %v986 = vadd.f32 %v930, 1.0
        %v987 = vadd.f32 %v932, 1.0
        %v988 = vadd.f32 %v934, 1.0
        %v989 = vadd.f32 %v936, 1.0
        %v990 = vadd.f32 %v938, 1.0
        %v991 = vadd.f32 %v940, 1.0
        %v992 = vadd.f32 %v942, 1.0
        %v993 = vadd.f32 %v944, 1.0
        %v994 = vadd.f32 %v946, 1.0
        %v995 = vadd.f32 %v948, 1.0
        %v996 = vadd.f32 %v950, 1.0
        %v997 = vadd.f32 %v952, 1.0
        %v998 = vadd.f32 %v954, 1.0
        %v999 = vadd.f32 %v956, 1.0
        %v1000 = vadd.f32 %v958, 1.0
        %v1001 = vadd.f32 %v960, 1.0
        %v1002 = vadd.f32 %v962, 1.0
        %v1003 = vadd.f32 %v964, 1.0
        %v1004 = vadd.f32 %v966, 1.0
        %v1005 = vadd.f32 %v968, 1.0
        %v1006 = vadd.f32 %v970, 1.0
        %v1007 = vadd.f32 %v972, 1.0
        %v1008 = vadd.f32 %v974, 1.0
        %v1009 = vadd.f32 %v976, 1.0
        %v1010 = vadd.f32 %v978, 1.0
        %v1011 = vrcp.pop %v979
        %v1012 = vmul.f32 1.0, %v1011
        %v1013 = vrcp.pop %v980
        %v1014 = vmul.f32 1.0, %v1013
        %v1015 = vrcp.pop %v981
        %v1016 = vmul.f32 1.0, %v1015
        %v1017 = vrcp.pop %v982
        %v1018 = vmul.f32 1.0, %v1017
        %v1019 = vrcp.pop %v983
        %v1020 = vmul.f32 1.0, %v1019
        %v1021 = vrcp.pop %v984
        %v1022 = vmul.f32 1.0, %v1021
        %v1023 = vrcp.pop %v985
        %v1024 = vmul.f32 1.0, %v1023
        %v1025 = vrcp.pop %v986
        %v1026 = vmul.f32 1.0, %v1025
        %v1027 = vrcp.pop %v987
        %v1028 = vmul.f32 1.0, %v1027
        %v1029 = vrcp.pop %v988
        %v1030 = vmul.f32 1.0, %v1029
        %v1031 = vrcp.pop %v989
        %v1032 = vmul.f32 1.0, %v1031
        %v1033 = vrcp.pop %v990
        %v1034 = vmul.f32 1.0, %v1033
        %v1035 = vrcp.pop %v991
        %v1036 = vmul.f32 1.0, %v1035
        %v1037 = vrcp.pop %v992
        %v1038 = vmul.f32 1.0, %v1037
        %v1039 = vrcp.pop %v993
        %v1040 = vmul.f32 1.0, %v1039
        %v1041 = vrcp.pop %v994
        %v1042 = vmul.f32 1.0, %v1041
        %v1043 = vrcp.pop %v995
        %v1044 = vmul.f32 1.0, %v1043
        %v1045 = vrcp.pop %v996
        %v1046 = vmul.f32 1.0, %v1045
        %v1047 = vrcp.pop %v997
        %v1048 = vmul.f32 1.0, %v1047
        %v1049 = vrcp.pop %v998
        %v1050 = vmul.f32 1.0, %v1049
        %v1051 = vrcp.pop %v999
        %v1052 = vmul.f32 1.0, %v1051
        %v1053 = vrcp.pop %v1000
        %v1054 = vmul.f32 1.0, %v1053
        %v1055 = vrcp.pop %v1001
        %v1056 = vmul.f32 1.0, %v1055
        %v1057 = vrcp.pop %v1002
        %v1058 = vmul.f32 1.0, %v1057
        %v1059 = vrcp.pop %v1003
        %v1060 = vmul.f32 1.0, %v1059
        %v1061 = vrcp.pop %v1004
        %v1062 = vmul.f32 1.0, %v1061
        %v1063 = vrcp.pop %v1005
        %v1064 = vmul.f32 1.0, %v1063
        %v1065 = vrcp.pop %v1006
        %v1066 = vmul.f32 1.0, %v1065
        %v1067 = vrcp.pop %v1007
        %v1068 = vmul.f32 1.0, %v1067
        %v1069 = vrcp.pop %v1008
        %v1070 = vmul.f32 1.0, %v1069
        %v1071 = vrcp.pop %v1009
        %v1072 = vmul.f32 1.0, %v1071
        %v1073 = vrcp.pop %v1010
        %v1074 = vmul.f32 1.0, %v1073
        %1075 = vst [vmem:[%s220] sm:$0xff] %v1012
        %1076 = vst [vmem:[%s220 + $0x8] sm:$0xff] %v1014
        %1077 = vst [vmem:[%s220 + $0x10] sm:$0xff] %v1016
        %1078 = vst [vmem:[%s220 + $0x18] sm:$0xff] %v1018
        %1079 = vst [vmem:[%s220 + $0x20] sm:$0xff] %v1020
        %1080 = vst [vmem:[%s220 + $0x28] sm:$0xff] %v1022
        %1081 = vst [vmem:[%s220 + $0x30] sm:$0xff] %v1024
        %1082 = vst [vmem:[%s220 + $0x38] sm:$0xff] %v1026
        %1083 = vst [vmem:[%s220 + $0x40] sm:$0xff] %v1028
        %1084 = vst [vmem:[%s220 + $0x48] sm:$0xff] %v1030
        %1085 = vst [vmem:[%s220 + $0x50] sm:$0xff] %v1032
        %1086 = vst [vmem:[%s220 + $0x58] sm:$0xff] %v1034
        %1087 = vst [vmem:[%s220 + $0x60] sm:$0xff] %v1036
        %1088 = vst [vmem:[%s220 + $0x68] sm:$0xff] %v1038
        %1089 = vst [vmem:[%s220 + $0x70] sm:$0xff] %v1040
        %1090 = vst [vmem:[%s220 + $0x78] sm:$0xff] %v1042
        %1091 = vst [vmem:[%s220 + $0x80] sm:$0xff] %v1044
        %1092 = vst [vmem:[%s220 + $0x88] sm:$0xff] %v1046
        %1093 = vst [vmem:[%s220 + $0x90] sm:$0xff] %v1048
        %1094 = vst [vmem:[%s220 + $0x98] sm:$0xff] %v1050
        %1095 = vst [vmem:[%s220 + $0xa0] sm:$0xff] %v1052
        %1096 = vst [vmem:[%s220 + $0xa8] sm:$0xff] %v1054
        %1097 = vst [vmem:[%s220 + $0xb0] sm:$0xff] %v1056
        %1098 = vst [vmem:[%s220 + $0xb8] sm:$0xff] %v1058
        %1099 = vst [vmem:[%s220 + $0xc0] sm:$0xff] %v1060
        %1100 = vst [vmem:[%s220 + $0xc8] sm:$0xff] %v1062
        %1101 = vst [vmem:[%s220 + $0xd0] sm:$0xff] %v1064
        %1102 = vst [vmem:[%s220 + $0xd8] sm:$0xff] %v1066
        %1103 = vst [vmem:[%s220 + $0xe0] sm:$0xff] %v1068
        %1104 = vst [vmem:[%s220 + $0xe8] sm:$0xff] %v1070
        %1105 = vst [vmem:[%s220 + $0xf0] sm:$0xff] %v1072
        %1106 = vst [vmem:[%s220 + $0xf8] sm:$0xff] %v1074
        %s1107 = sand.u32 %s137, 1
        %s1108 = scalar_lea.sflag [#allocation3], %s1107
        %s1109 = sand.u32 %s137, 1
        %s1110 = smul.addr %s1109, 256
        %s1111 = scalar_lea.vmem [#allocation2], %s1110
        // Predicated region
        $region41: #{autoencoder_forward.1} parent=39 // pred_check
          %p1112 = pneg %p147
        $region42: #{autoencoder_forward.1} parent=39 // pred_check_branch
          %1114 = sbr.rel (%p1112) target = $region44
        $region43: #{autoencoder_forward.1} parent=39 // pred_region
          %s1115 = smul.u32 16, %s19
          %s1117 = ssub.s32 4096, 4096
          %1118 = vsyncadd %s1108, %s1117
          %s1119 = smul.addr %s1115, 2
          %s1120 = smul.addr %s1119, 128
          %s1121 = scalar_lea.hbm %s5, %s1120
          %s1122 = sshll.u32 %s1111, 4
          %s1123 = int_to_ptr.vmem [resolvable:$true] %s1122
          %1128 = dma.vmem_to_hbm [thread:$0]  %s1123, 4096, %s1121, %s1108, 256, 256, 16
        $region44: #{autoencoder_forward.1} parent=39 // pred_fallthru
          _
      $region40: #{autoencoder_forward.1} parent=5 // pred_fallthru
        _
      %p1129 = scmp.le.s32.totalorder 2, %s14
      // Predicated region
      $region45: #{autoencoder_forward.1} parent=5 // pred_check
        %p1130 = pneg %p1129
      $region46: #{autoencoder_forward.1} parent=5 // pred_check_branch
        %1132 = sbr.rel (%p1130) target = $region48
      $region47: #{autoencoder_forward.1} parent=5 // pred_region
        %s1133 = ssub.s32 %s14, 2
        // Predicated region
        $region49: #{autoencoder_forward.1} parent=47 // pred_check
          %p1134 = pneg %p153
        $region50: #{autoencoder_forward.1} parent=47 // pred_check_branch
          %1136 = sbr.rel (%p1134) target = $region52
        $region51: #{autoencoder_forward.1} parent=47 // pred_region
          %s1137 = sand.u32 %s138, 1
          %s1138 = scalar_lea.sflag [#allocation3], %s1137
          %s1139 = sand.u32 %s138, 1
          %s1140 = smul.addr %s1139, 256
          %s1141 = scalar_lea.vmem [#allocation2], %s1140
          %1142 = dma.done %s1138, 4096
        $region52: #{autoencoder_forward.1} parent=47 // pred_fallthru
          _
      $region48: #{autoencoder_forward.1} parent=5 // pred_fallthru
        _
    $region6: #{autoencoder_forward.1} parent=1 // loop_footer
      %s18 = sadd.s32 1, %s14
    $region7: #{autoencoder_forward.1} parent=1 // loop_footer_branch
      %13 = sbr.rel target = $region3
    $region8: #{autoencoder_forward.1} parent=1 // loop_exit
      _
    %1143 = vsyncpa [#allocation3], 1
    %s1144 = scalar_lea.sflag [#allocation3], 1
    %1145 = vsyncpa %s1144, 1

</llo_original>
